<compile_context>
chip_gen: v6e
topology: v6e:2x2x1
jax: 0.10.0
libtpu: 0.0.40
codegen_flags: <defaults>
</compile_context>

<pallas_src>
import jax
import jax.numpy as jnp
from jax.experimental import pallas as pl
from jax.experimental.pallas import tpu as pltpu


def _make_kernel(*, C, S, G_inner, HW, HW_pad):
    needs_mask = (HW_pad != HW)

    def kernel(o_ref, t_ref, inter_ref, denom_ref):
        # o_ref / t_ref: (C, S, 128) block of one batch element.
        # inter_ref / denom_ref: (C, 128) lane-dense per-channel partial sums
        #   for this (batch, outer-spatial) tile; resident across the inner
        #   (reduction) grid axis.
        gi = pl.program_id(2)

        @pl.when(gi == 0)
        def _():
            inter_ref[...] = jnp.zeros_like(inter_ref)
            denom_ref[...] = jnp.zeros_like(denom_ref)

        x = o_ref[...].astype(jnp.float32)   # (C, S, 128)
        t = t_ref[...].astype(jnp.float32)   # (C, S, 128)

        # Softmax over the channel axis (axis 0).  C is a leading (non-vreg)
        # axis, so these reductions are elementwise max/add over C fully
        # packed (S, 128) slabs on the VPU; exp goes to the EUP.
        # TODO(synk): for large C (>= ~32 classes) a fori_loop over C for the
        # max/sum passes would limit live slabs / vreg pressure.
        m = jnp.max(x, axis=0, keepdims=True)          # (1, S, 128)
        e = jnp.exp(x - m)                             # (C, S, 128)
        z = jnp.sum(e, axis=0, keepdims=True)          # (1, S, 128)
        # approx=False keeps the 1e-5 tolerance; approx=True (EUP vrcp) is a
        # v7x option once HBM stops being the bottleneck.
        s = e * pl.reciprocal(z, approx=False)         # (C, S, 128)

        if needs_mask:
            # Zero out wrapper-side spatial padding (HW padded up to HW_pad).
            bidx = pl.program_id(1) * G_inner + gi
            sub = jax.lax.broadcasted_iota(jnp.int32, (1, S, 128), 1)
            lane = jax.lax.broadcasted_iota(jnp.int32, (1, S, 128), 2)
            gidx = (bidx * S + sub) * 128 + lane
            valid = (gidx < HW).astype(jnp.float32)
            s = s * valid
            t = t * valid

        # One cross-sublane (XLU) reduce per step into the small resident
        # accumulators; no full-block scratch read-modify-write.
        inter_ref[...] += jnp.sum(s * t, axis=1)       # (C, 128)
        denom_ref[...] += jnp.sum(s + t, axis=1)       # (C, 128)

    return kernel


def _plan_tiling(HW, C, itemsize, *, target_block_bytes=2 << 20,
                 residency_budget_bytes=36 << 20):
    """Pick (S, G_total, HW_pad): sublanes per block, number of spatial
    blocks, and padded flattened-spatial size (multiple of S*128)."""
    s_raw = -(-HW // 128)                 # 128-lane rows needed
    row_in = C * 128 * itemsize           # input bytes per sublane row/block
    row_f32 = C * 128 * 4                 # f32 working-set bytes per row
    # Residency per sublane: 2 inputs x 2 pipeline buffers + ~6 f32 temporaries.
    per_s = 4 * row_in + 6 * row_f32
    s_desired = min(max(8, target_block_bytes // row_in),
                    max(8, residency_budget_bytes // per_s))
    if HW % 128 == 0 and s_raw <= s_desired:
        # Single full-extent spatial block per batch element: no pad, no mask.
        return s_raw, 1, HW
    S = max(8, (min(s_desired, s_raw) // 8) * 8)
    G_total = -(-s_raw // S)
    return S, G_total, G_total * S * 128


def _pick_outer(G_total, N, *, min_parallel_items=2):
    """Smallest divisor of G_total giving >= min_parallel_items independent
    (batch, outer-spatial) work items (v7x megacore load balance)."""
    need = -(-min_parallel_items // max(N, 1))
    if need <= 1 or G_total <= 1:
        return 1
    for d in range(need, G_total + 1):
        if G_total % d == 0:
            return d
    return G_total


def dice_loss(output, target, *, target_block_bytes=2 << 20):
    """output, target: (N, C, *spatial) float arrays -> scalar f32 loss."""
    assert output.shape == target.shape, "'input' and 'target' must have the same shape"
    N, C = output.shape[0], output.shape[1]
    HW = 1
    for d in output.shape[2:]:
        HW *= d

    itemsize = jnp.dtype(output.dtype).itemsize
    S, G_total, HW_pad = _plan_tiling(HW, C, itemsize,
                                      target_block_bytes=target_block_bytes)
    G_outer = _pick_outer(G_total, N)
    G_inner = G_total // G_outer

    # Free, contiguous reshape — no transpose, NCHW layout preserved.
    o3 = output.reshape(N, C, HW)
    t3 = target.reshape(N, C, HW)
    if HW_pad != HW:
        pad = ((0, 0), (0, 0), (0, HW_pad - HW))
        o3 = jnp.pad(o3, pad)
        t3 = jnp.pad(t3, pad)
    o4 = o3.reshape(N, C, HW_pad // 128, 128)
    t4 = t3.reshape(N, C, HW_pad // 128, 128)

    kernel = _make_kernel(C=C, S=S, G_inner=G_inner, HW=HW, HW_pad=HW_pad)

    in_map = lambda n, go, gi: (n, 0, go * G_inner + gi, 0)
    out_map = lambda n, go, gi: (n, go, 0, 0)

    # Scoped-VMEM limit from the residency formula (headroom under v7x 64 MiB).
    block_bytes_in = C * S * 128 * itemsize
    vmem_limit = min(4 * block_bytes_in + 6 * C * S * 128 * 4 + (8 << 20),
                     56 << 20)

    inter, denom = pl.pallas_call(
        kernel,
        out_shape=(
            jax.ShapeDtypeStruct((N, G_outer, C, 128), jnp.float32),
            jax.ShapeDtypeStruct((N, G_outer, C, 128), jnp.float32),
        ),
        grid_spec=pltpu.PrefetchScalarGridSpec(
            num_scalar_prefetch=0,
            grid=(N, G_outer, G_inner),
            in_specs=[
                pl.BlockSpec((None, C, S, 128), in_map),
                pl.BlockSpec((None, C, S, 128), in_map),
            ],
            out_specs=[
                pl.BlockSpec((None, None, C, 128), out_map),
                pl.BlockSpec((None, None, C, 128), out_map),
            ],
        ),
        compiler_params=pltpu.CompilerParams(
            # Batch and outer-spatial axes are independent work items (lets
            # v7x's two TensorCores split them; near-no-op on 1-TC v5e/v6e).
            # The inner spatial axis is the carried reduction, kept last.
            dimension_semantics=("parallel", "parallel", "arbitrary"),
            vmem_limit_bytes=int(vmem_limit),
        ),
    )(o4, t4)

    # Tiny final reduction in plain JAX: (N, G_outer, C, 128) -> per-channel.
    intersect = jnp.sum(inter, axis=(0, 1, 3))      # (C,)
    denominator = jnp.sum(denom, axis=(0, 1, 3))    # (C,)
    dice = intersect / denominator                  # TODO(synk): no epsilon guard, matching the PyTorch forward
    return 1.0 - jnp.mean(dice)


def _dice_loss_ref(output, target):
    """Pure-JAX reference matching the PyTorch module."""
    C = output.shape[1]
    s = jax.nn.softmax(output, axis=1)
    perm = (1, 0) + tuple(range(2, output.ndim))
    o2 = jnp.transpose(s, perm).reshape(C, -1)
    t2 = jnp.transpose(target, perm).reshape(C, -1)
    intersect = jnp.sum(o2 * t2, axis=-1)
    denom = jnp.sum(o2 + t2, axis=-1)
    return 1.0 - jnp.mean(intersect / denom)


if __name__ == "__main__":
    key = jax.random.PRNGKey(0)
    k1, k2 = jax.random.split(key)
    N, C, H, W = 2, 4, 16, 16
    output = jax.random.normal(k1, (N, C, H, W), dtype=jnp.float32)
    target = jax.random.normal(k2, (N, C, H, W), dtype=jnp.float32)

    loss = jax.block_until_ready(dice_loss(output, target))
    ref = jax.block_until_ready(_dice_loss_ref(output, target))

    assert jnp.allclose(loss, ref, rtol=1e-5, atol=1e-5), (loss, ref)
    print("KERNEL_OK")
</pallas_src>

<mosaic_0001>
module attributes {stable_mosaic.version = 11 : i64} {
  func.func @kernel(%arg0: i32, %arg1: i32, %arg2: i32, %arg3: memref<1x4x2x128xf32, #tpu.memory_space<vmem>>, %arg4: memref<1x4x2x128xf32, #tpu.memory_space<vmem>>, %arg5: memref<1x1x4x128xf32, #tpu.memory_space<vmem>>, %arg6: memref<1x1x4x128xf32, #tpu.memory_space<vmem>>) attributes {dimension_semantics = [#tpu.dimension_semantics<parallel>, #tpu.dimension_semantics<parallel>, #tpu.dimension_semantics<arbitrary>], iteration_bounds = array<i64: 2, 1, 1>, scalar_prefetch = 0 : i64, scratch_operands = 0 : i64, tpu.core_type = #tpu.core_type<tc>, window_params = [{transform_indices = @transform_0, window_bounds = array<i64: 1, 4, 2, 128>}, {transform_indices = @transform_1, window_bounds = array<i64: 1, 4, 2, 128>}, {transform_indices = @transform_2, window_bounds = array<i64: 1, 1, 4, 128>}, {transform_indices = @transform_3, window_bounds = array<i64: 1, 1, 4, 128>}]} {
    %c0_i32 = arith.constant 0 : i32
    %0 = arith.cmpi eq, %arg2, %c0_i32 : i32
    %1 = arith.extui %0 : i1 to i32
    %c0_i32_0 = arith.constant 0 : i32
    %2 = arith.cmpi ne, %1, %c0_i32_0 : i32
    scf.if %2 {
      %cst_27 = arith.constant 0.000000e+00 : f32
      %33 = vector.broadcast %cst_27 : f32 to vector<4x128xf32>
      %c0_28 = arith.constant 0 : index
      %c0_29 = arith.constant 0 : index
      %c0_30 = arith.constant 0 : index
      %c0_31 = arith.constant 0 : index
      %34 = vector.load %arg5[%c0_28, %c0_29, %c0_30, %c0_31] : memref<1x1x4x128xf32, #tpu.memory_space<vmem>>, vector<1x1x4x128xf32>
      %35 = vector.shape_cast %34 : vector<1x1x4x128xf32> to vector<4x128xf32>
      %36 = vector.shape_cast %33 : vector<4x128xf32> to vector<1x1x4x128xf32>
      tpu.vector_store %arg5[%c0_28, %c0_29, %c0_30, %c0_31], %36 {strides = array<i32>} : memref<1x1x4x128xf32, #tpu.memory_space<vmem>>, vector<1x1x4x128xf32>,
      %cst_32 = arith.constant 0.000000e+00 : f32
      %37 = vector.broadcast %cst_32 : f32 to vector<4x128xf32>
      %c0_33 = arith.constant 0 : index
      %c0_34 = arith.constant 0 : index
      %c0_35 = arith.constant 0 : index
      %c0_36 = arith.constant 0 : index
      %38 = vector.load %arg6[%c0_33, %c0_34, %c0_35, %c0_36] : memref<1x1x4x128xf32, #tpu.memory_space<vmem>>, vector<1x1x4x128xf32>
      %39 = vector.shape_cast %38 : vector<1x1x4x128xf32> to vector<4x128xf32>
      %40 = vector.shape_cast %37 : vector<4x128xf32> to vector<1x1x4x128xf32>
      tpu.vector_store %arg6[%c0_33, %c0_34, %c0_35, %c0_36], %40 {strides = array<i32>} : memref<1x1x4x128xf32, #tpu.memory_space<vmem>>, vector<1x1x4x128xf32>,
    } else {
    }
    %c0 = arith.constant 0 : index
    %c0_1 = arith.constant 0 : index
    %c0_2 = arith.constant 0 : index
    %c0_3 = arith.constant 0 : index
    %3 = vector.load %arg3[%c0, %c0_1, %c0_2, %c0_3] : memref<1x4x2x128xf32, #tpu.memory_space<vmem>>, vector<1x4x2x128xf32>
    %4 = vector.shape_cast %3 : vector<1x4x2x128xf32> to vector<4x2x128xf32>
    %c0_4 = arith.constant 0 : index
    %c0_5 = arith.constant 0 : index
    %c0_6 = arith.constant 0 : index
    %c0_7 = arith.constant 0 : index
    %5 = vector.load %arg4[%c0_4, %c0_5, %c0_6, %c0_7] : memref<1x4x2x128xf32, #tpu.memory_space<vmem>>, vector<1x4x2x128xf32>
    %6 = vector.shape_cast %5 : vector<1x4x2x128xf32> to vector<4x2x128xf32>
    %cst = arith.constant dense<0xFF800000> : vector<2x128xf32>
    %7 = vector.multi_reduction <maximumf>, %4, %cst [0] : vector<4x2x128xf32> to vector<2x128xf32>
    %8 = vector.shape_cast %7 : vector<2x128xf32> to vector<1x2x128xf32>
    %9 = vector.broadcast %8 : vector<1x2x128xf32> to vector<4x2x128xf32>
    %10 = arith.subf %4, %9 : vector<4x2x128xf32>
    %11 = math.exp %10 : vector<4x2x128xf32>
    %cst_8 = arith.constant dense<0.000000e+00> : vector<2x128xf32>
    %12 = vector.multi_reduction <add>, %11, %cst_8 [0] : vector<4x2x128xf32> to vector<2x128xf32>
    %13 = vector.shape_cast %12 : vector<2x128xf32> to vector<1x2x128xf32>
    %14 = tpu.reciprocal %13 : vector<1x2x128xf32> -> vector<1x2x128xf32>
    %15 = vector.broadcast %14 : vector<1x2x128xf32> to vector<4x2x128xf32>
    %16 = arith.mulf %11, %15 : vector<4x2x128xf32>
    %c0_9 = arith.constant 0 : index
    %c0_10 = arith.constant 0 : index
    %c0_11 = arith.constant 0 : index
    %c0_12 = arith.constant 0 : index
    %17 = vector.load %arg5[%c0_9, %c0_10, %c0_11, %c0_12] : memref<1x1x4x128xf32, #tpu.memory_space<vmem>>, vector<1x1x4x128xf32>
    %18 = vector.shape_cast %17 : vector<1x1x4x128xf32> to vector<4x128xf32>
    %19 = arith.mulf %16, %6 : vector<4x2x128xf32>
    %cst_13 = arith.constant dense<0.000000e+00> : vector<4x128xf32>
    %20 = vector.multi_reduction <add>, %19, %cst_13 [1] : vector<4x2x128xf32> to vector<4x128xf32>
    %21 = arith.addf %18, %20 : vector<4x128xf32>
    %c0_14 = arith.constant 0 : index
    %c0_15 = arith.constant 0 : index
    %c0_16 = arith.constant 0 : index
    %c0_17 = arith.constant 0 : index
    %22 = vector.load %arg5[%c0_14, %c0_15, %c0_16, %c0_17] : memref<1x1x4x128xf32, #tpu.memory_space<vmem>>, vector<1x1x4x128xf32>
    %23 = vector.shape_cast %22 : vector<1x1x4x128xf32> to vector<4x128xf32>
    %24 = vector.shape_cast %21 : vector<4x128xf32> to vector<1x1x4x128xf32>
    tpu.vector_store %arg5[%c0_14, %c0_15, %c0_16, %c0_17], %24 {strides = array<i32>} : memref<1x1x4x128xf32, #tpu.memory_space<vmem>>, vector<1x1x4x128xf32>,
    %c0_18 = arith.constant 0 : index
    %c0_19 = arith.constant 0 : index
    %c0_20 = arith.constant 0 : index
    %c0_21 = arith.constant 0 : index
    %25 = vector.load %arg6[%c0_18, %c0_19, %c0_20, %c0_21] : memref<1x1x4x128xf32, #tpu.memory_space<vmem>>, vector<1x1x4x128xf32>
    %26 = vector.shape_cast %25 : vector<1x1x4x128xf32> to vector<4x128xf32>
    %27 = arith.addf %16, %6 : vector<4x2x128xf32>
    %cst_22 = arith.constant dense<0.000000e+00> : vector<4x128xf32>
    %28 = vector.multi_reduction <add>, %27, %cst_22 [1] : vector<4x2x128xf32> to vector<4x128xf32>
    %29 = arith.addf %26, %28 : vector<4x128xf32>
    %c0_23 = arith.constant 0 : index
    %c0_24 = arith.constant 0 : index
    %c0_25 = arith.constant 0 : index
    %c0_26 = arith.constant 0 : index
    %30 = vector.load %arg6[%c0_23, %c0_24, %c0_25, %c0_26] : memref<1x1x4x128xf32, #tpu.memory_space<vmem>>, vector<1x1x4x128xf32>
    %31 = vector.shape_cast %30 : vector<1x1x4x128xf32> to vector<4x128xf32>
    %32 = vector.shape_cast %29 : vector<4x128xf32> to vector<1x1x4x128xf32>
    tpu.vector_store %arg6[%c0_23, %c0_24, %c0_25, %c0_26], %32 {strides = array<i32>} : memref<1x1x4x128xf32, #tpu.memory_space<vmem>>, vector<1x1x4x128xf32>,
    return
  }
  func.func @transform_0(%arg0: i32, %arg1: i32, %arg2: i32) -> (i32, i32, i32, i32) {
    %c1_i32 = arith.constant 1 : i32
    %0 = arith.muli %arg1, %c1_i32 : i32
    %1 = arith.addi %0, %arg2 : i32
    %c0_i32 = arith.constant 0 : i32
    %c0_i32_0 = arith.constant 0 : i32
    %c0_i32_1 = arith.constant 0 : i32
    return %arg0, %c0_i32, %1, %c0_i32_0 : i32, i32, i32, i32
  }
  func.func @transform_1(%arg0: i32, %arg1: i32, %arg2: i32) -> (i32, i32, i32, i32) {
    %c1_i32 = arith.constant 1 : i32
    %0 = arith.muli %arg1, %c1_i32 : i32
    %1 = arith.addi %0, %arg2 : i32
    %c0_i32 = arith.constant 0 : i32
    %c0_i32_0 = arith.constant 0 : i32
    %c0_i32_1 = arith.constant 0 : i32
    return %arg0, %c0_i32, %1, %c0_i32_0 : i32, i32, i32, i32
  }
  func.func @transform_2(%arg0: i32, %arg1: i32, %arg2: i32) -> (i32, i32, i32, i32) {
    %c0_i32 = arith.constant 0 : i32
    %c0_i32_0 = arith.constant 0 : i32
    %c0_i32_1 = arith.constant 0 : i32
    return %arg0, %arg1, %c0_i32, %c0_i32_0 : i32, i32, i32, i32
  }
  func.func @transform_3(%arg0: i32, %arg1: i32, %arg2: i32) -> (i32, i32, i32, i32) {
    %c0_i32 = arith.constant 0 : i32
    %c0_i32_0 = arith.constant 0 : i32
    %c0_i32_1 = arith.constant 0 : i32
    return %arg0, %arg1, %c0_i32, %c0_i32_0 : i32, i32, i32, i32
  }
}

</mosaic_0001>

<llo_original>
// kernel: tpu_custom_call.1
$region0: #{tpu_custom_call.1}
  #allocation0 [shape = 'u32[]', space=smem, size = 0x4, offset = 0x4, fixed_abs, tag = 'smem constant byte address 0x4 - core index']
  #allocation1 [shape = 'u32[144,128]{1,0:T(1,128)}', space=vmem, size = 0x12000, scoped, tag = 'internal scratch']
  %s0 = inlined_call_operand.hbm [shape: f32[2,4,2,128], index: 0, kind: input, shape index: {}]
  %s1 = inlined_call_operand.hbm [shape: f32[2,4,2,128], index: 1, kind: input, shape index: {}]
  %s2 = inlined_call_operand.hbm [shape: f32[2,1,4,128], index: 2, kind: output, shape index: {0}]
  %s3 = inlined_call_operand.hbm [shape: f32[2,1,4,128], index: 3, kind: output, shape index: {1}]
  %4 = xla_tuple %s2, %s3
  %s5 = sld [smem:[#allocation0]]
  $region61: #{tpu_custom_call.1} parent=0
    _
  %s7 = ssub.s32 1, %s5
  %s8 = scalar_select 0, %s7, %s5
  $region1: #{tpu_custom_call.1} parent=0
    #allocation2 [shape = 'u8[8192]{0}', space=vmem, size = 0x2000, scoped, tag = 'input window, operand 0']
    #allocation3 [shape = 's32[2]{0}', space=sflag, size = 0x8, scoped, tag = 'scoped memory for tpu_custom_call.1']
    #allocation4 [shape = 's32[2]{0}', space=sflag, size = 0x8, scoped, tag = 'scoped memory for tpu_custom_call.1']
    #allocation5 [shape = 'u8[8192]{0}', space=vmem, size = 0x2000, scoped, tag = 'input window, operand 1']
    #allocation6 [shape = 's32[2]{0}', space=sflag, size = 0x8, scoped, tag = 'scoped memory for tpu_custom_call.1']
    #allocation7 [shape = 'u8[4096]{0}', space=vmem, size = 0x1000, scoped, tag = 'output window, operand 0']
    #allocation8 [shape = 'u8[4096]{0}', space=vmem, size = 0x1000, scoped, tag = 'output window, operand 1']
    #allocation9 [shape = 's32[2]{0}', space=sflag, size = 0x8, scoped, tag = 'scoped memory for tpu_custom_call.1']
    %9 = vsyncpa [#allocation3], 0
    %s10 = scalar_lea.sflag [#allocation3], 1
    %11 = vsyncpa %s10, 0
    %12 = vsyncpa [#allocation6], 0
    %s13 = scalar_lea.sflag [#allocation6], 1
    %14 = vsyncpa %s13, 0
    %15 = vsyncpa [#allocation4], 0
    %s16 = scalar_lea.sflag [#allocation4], 1
    %17 = vsyncpa %s16, 0
    %18 = vsyncpa [#allocation9], 0
    %s19 = scalar_lea.sflag [#allocation9], 1
    %20 = vsyncpa %s19, 0
    loop: start=0, step=1, limit=4
    $region2: #{tpu_custom_call.1} parent=1 // loop_pre_header
      _
    $region3: #{tpu_custom_call.1} parent=1 // loop_header
      %s22 = sphi 0, %s26
      %p23 = scmp.ge.s32.totalorder %s22, 4
      %s29 = sphi 0, %s48
      %s30 = sphi 0, %s44
      %s31 = sphi 0, %s40
      %s32 = sphi 0, %s29
      %s33 = sphi 0, %s30
      %s34 = sphi 0, %s31
      %s35 = sphi 0, %s32
      %s36 = sphi 0, %s33
      %s37 = sphi 0, %s34
      %s55 = sphi 0, %s57
      %s58 = sphi 0, %s55
      %s59 = sphi 0, %s58
      %s75 = sphi 0, %s59
      %s85 = sphi 0, %s87
      %s88 = sphi 0, %s85
      %s89 = sphi 0, %s88
      %s105 = sphi 0, %s89
      %s113 = sphi 0, %s115
      %s116 = sphi 0, %s113
      %s117 = sphi 0, %s116
      %s133 = sphi 0, %s117
      %s141 = sphi 0, %s143
      %s144 = sphi 0, %s141
      %s145 = sphi 0, %s144
      %s161 = sphi 0, %s145
    $region4: #{tpu_custom_call.1} parent=1 // loop_header_branch
      %25 = sbr.rel (%p23) target = $region8
    $region5: #{tpu_custom_call.1} parent=1 // loop_body
      %s27 = ssub.s32 %s22, 1
      %s28 = ssub.s32 %s22, 2
      %s38 = sadd.s32 1, %s31
      %p39 = scmp.ge.s32.totalorder %s38, 1
      %s40 = scalar_select %p39, 0, %s38
      %s41 = sadd.s32 1, %s30
      %s42 = scalar_select %p39, %s41, %s30
      %p43 = scmp.ge.s32.totalorder %s42, 1
      %s44 = scalar_select %p43, 0, %s42
      %s45 = sadd.s32 1, %s29
      %s46 = scalar_select %p43, %s45, %s29
      %p47 = scmp.ge.s32.totalorder %s46, 2
      %s48 = scalar_select %p47, 0, %s46
      %s49 = sadd.s32 %s30, %s31
      %s50 = sadd.s32 %s44, %s40
      %s51 = ssub.s32 %s29, %s48
      %s52 = ssub.s32 %s49, %s50
      %s53 = sor.u32 %s51, %s52
      %p54 = scmp.eq.s32.totalorder %s53, 0
      %s56 = sadd.s32 %s55, 1
      %s57 = scalar_select %p54, %s55, %s56
      %p60 = pneg %p54
      %p61 = scmp.eq.s32.totalorder %s22, 1
      %p62 = por %p60, %p61
      %p63 = scmp.ne.s32.totalorder %s55, %s58
      %p64 = scmp.eq.s32.totalorder %s22, 0
      %p65 = por %p63, %p64
      %p66 = scmp.ne.s32.totalorder %s55, %s58
      %p67 = scmp.eq.s32.totalorder %s27, 1
      %p68 = por %p66, %p67
      %p69 = scmp.ne.s32.totalorder %s58, %s59
      %p70 = scmp.eq.s32.totalorder %s27, 0
      %p71 = por %p69, %p70
      %p72 = scmp.ne.s32.totalorder %s58, %s59
      %p73 = scmp.eq.s32.totalorder %s28, 1
      %p74 = por %p72, %p73
      %p76 = scmp.ne.s32.totalorder %s59, %s75
      %p77 = scmp.eq.s32.totalorder %s28, 0
      %p78 = por %p76, %p77
      %s79 = sadd.s32 %s30, %s31
      %s80 = sadd.s32 %s44, %s40
      %s81 = ssub.s32 %s29, %s48
      %s82 = ssub.s32 %s79, %s80
      %s83 = sor.u32 %s81, %s82
      %p84 = scmp.eq.s32.totalorder %s83, 0
      %s86 = sadd.s32 %s85, 1
      %s87 = scalar_select %p84, %s85, %s86
      %p90 = pneg %p84
      %p91 = scmp.eq.s32.totalorder %s22, 1
      %p92 = por %p90, %p91
      %p93 = scmp.ne.s32.totalorder %s85, %s88
      %p94 = scmp.eq.s32.totalorder %s22, 0
      %p95 = por %p93, %p94
      %p96 = scmp.ne.s32.totalorder %s85, %s88
      %p97 = scmp.eq.s32.totalorder %s27, 1
      %p98 = por %p96, %p97
      %p99 = scmp.ne.s32.totalorder %s88, %s89
      %p100 = scmp.eq.s32.totalorder %s27, 0
      %p101 = por %p99, %p100
      %p102 = scmp.ne.s32.totalorder %s88, %s89
      %p103 = scmp.eq.s32.totalorder %s28, 1
      %p104 = por %p102, %p103
      %p106 = scmp.ne.s32.totalorder %s89, %s105
      %p107 = scmp.eq.s32.totalorder %s28, 0
      %p108 = por %p106, %p107
      %s109 = ssub.s32 %s29, %s48
      %s110 = ssub.s32 %s30, %s44
      %s111 = sor.u32 %s109, %s110
      %p112 = scmp.eq.s32.totalorder %s111, 0
      %s114 = sadd.s32 %s113, 1
      %s115 = scalar_select %p112, %s113, %s114
      %p118 = pneg %p112
      %p119 = scmp.eq.s32.totalorder %s22, 1
      %p120 = por %p118, %p119
      %p121 = scmp.ne.s32.totalorder %s113, %s116
      %p122 = scmp.eq.s32.totalorder %s22, 0
      %p123 = por %p121, %p122
      %p124 = scmp.ne.s32.totalorder %s113, %s116
      %p125 = scmp.eq.s32.totalorder %s27, 1
      %p126 = por %p124, %p125
      %p127 = scmp.ne.s32.totalorder %s116, %s117
      %p128 = scmp.eq.s32.totalorder %s27, 0
      %p129 = por %p127, %p128
      %p130 = scmp.ne.s32.totalorder %s116, %s117
      %p131 = scmp.eq.s32.totalorder %s28, 1
      %p132 = por %p130, %p131
      %p134 = scmp.ne.s32.totalorder %s117, %s133
      %p135 = scmp.eq.s32.totalorder %s28, 0
      %p136 = por %p134, %p135
      %s137 = ssub.s32 %s29, %s48
      %s138 = ssub.s32 %s30, %s44
      %s139 = sor.u32 %s137, %s138
      %p140 = scmp.eq.s32.totalorder %s139, 0
      %s142 = sadd.s32 %s141, 1
      %s143 = scalar_select %p140, %s141, %s142
      %p146 = pneg %p140
      %p147 = scmp.eq.s32.totalorder %s22, 1
      %p148 = por %p146, %p147
      %p149 = scmp.ne.s32.totalorder %s141, %s144
      %p150 = scmp.eq.s32.totalorder %s22, 0
      %p151 = por %p149, %p150
      %p152 = scmp.ne.s32.totalorder %s141, %s144
      %p153 = scmp.eq.s32.totalorder %s27, 1
      %p154 = por %p152, %p153
      %p155 = scmp.ne.s32.totalorder %s144, %s145
      %p156 = scmp.eq.s32.totalorder %s27, 0
      %p157 = por %p155, %p156
      %p158 = scmp.ne.s32.totalorder %s144, %s145
      %p159 = scmp.eq.s32.totalorder %s28, 1
      %p160 = por %p158, %p159
      %p162 = scmp.ne.s32.totalorder %s145, %s161
      %p163 = scmp.eq.s32.totalorder %s28, 0
      %p164 = por %p162, %p163
      %p165 = scmp.le.s32.totalorder 1, %s22
      %p166 = scmp.lt.s32.totalorder %s22, 3
      %p167 = pnand %p165, %p166
      %p168 = pneg %p167
      // Predicated region
      $region9: #{tpu_custom_call.1} parent=5 // pred_check
        _
      $region10: #{tpu_custom_call.1} parent=5 // pred_check_branch
        %170 = sbr.rel (%p167) target = $region12
      $region11: #{tpu_custom_call.1} parent=5 // pred_region
        %s171 = ssub.s32 %s22, 1
      $region12: #{tpu_custom_call.1} parent=5 // pred_fallthru
        _
      %p172 = scmp.lt.s32.totalorder %s22, 2
      // Predicated region
      $region13: #{tpu_custom_call.1} parent=5 // pred_check
        %p173 = pneg %p172
      $region14: #{tpu_custom_call.1} parent=5 // pred_check_branch
        %175 = sbr.rel (%p173) target = $region16
      $region15: #{tpu_custom_call.1} parent=5 // pred_region
        // Predicated region
        $region17: #{tpu_custom_call.1} parent=15 // pred_check
          %p176 = pneg %p65
        $region18: #{tpu_custom_call.1} parent=15 // pred_check_branch
          %178 = sbr.rel (%p176) target = $region20
        $region19: #{tpu_custom_call.1} parent=15 // pred_region
          %s179 = sand.u32 %s55, 1
          %s180 = scalar_lea.sflag [#allocation3], %s179
          %s181 = sand.u32 %s55, 1
          %s182 = smul.addr %s181, 8
          %s183 = scalar_lea.vmem [#allocation2], %s182
          %s184 = sadd.s32 %s30, %s31
          %s186 = ssub.s32 128, 128
          %187 = vsyncadd %s180, %s186
          %s188 = smul.addr %s29, 4
          %s189 = sadd.s32 %s184, %s188
          %s190 = smul.addr %s189, 32
          %s191 = scalar_lea.hbm %s0, %s190
          %s192 = sshll.u32 %s183, 4
          %s193 = int_to_ptr.vmem [resolvable:$true] %s192
          %198 = dma.hbm_to_vmem [thread:$0]  %s191, 128, %s193, %s180, 32, 32, 2
        $region20: #{tpu_custom_call.1} parent=15 // pred_fallthru
          _
        // Predicated region
        $region21: #{tpu_custom_call.1} parent=15 // pred_check
          %p199 = pneg %p95
        $region22: #{tpu_custom_call.1} parent=15 // pred_check_branch
          %201 = sbr.rel (%p199) target = $region24
        $region23: #{tpu_custom_call.1} parent=15 // pred_region
          %s202 = sand.u32 %s85, 1
          %s203 = scalar_lea.sflag [#allocation6], %s202
          %s204 = sand.u32 %s85, 1
          %s205 = smul.addr %s204, 8
          %s206 = scalar_lea.vmem [#allocation5], %s205
          %s207 = sadd.s32 %s30, %s31
          %s209 = ssub.s32 128, 128
          %210 = vsyncadd %s203, %s209
          %s211 = smul.addr %s29, 4
          %s212 = sadd.s32 %s207, %s211
          %s213 = smul.addr %s212, 32
          %s214 = scalar_lea.hbm %s1, %s213
          %s215 = sshll.u32 %s206, 4
          %s216 = int_to_ptr.vmem [resolvable:$true] %s215
          %221 = dma.hbm_to_vmem [thread:$0]  %s214, 128, %s216, %s203, 32, 32, 2
        $region24: #{tpu_custom_call.1} parent=15 // pred_fallthru
          _
      $region16: #{tpu_custom_call.1} parent=5 // pred_fallthru
        _
      %p222 = scmp.le.s32.totalorder 1, %s22
      %p223 = scmp.lt.s32.totalorder %s22, 3
      %p224 = pnand %p222, %p223
      %p225 = pneg %p224
      // Predicated region
      $region25: #{tpu_custom_call.1} parent=5 // pred_check
        _
      $region26: #{tpu_custom_call.1} parent=5 // pred_check_branch
        %227 = sbr.rel (%p224) target = $region28
      $region27: #{tpu_custom_call.1} parent=5 // pred_region
        %s228 = ssub.s32 %s22, 1
        %s229 = sand.u32 %s58, 1
        %s230 = scalar_lea.sflag [#allocation3], %s229
        %s231 = sand.u32 %s58, 1
        %s232 = smul.addr %s231, 8
        %s233 = scalar_lea.vmem [#allocation2], %s232
        // Predicated region
        $region29: #{tpu_custom_call.1} parent=27 // pred_check
          %p234 = pneg %p71
        $region30: #{tpu_custom_call.1} parent=27 // pred_check_branch
          %236 = sbr.rel (%p234) target = $region32
        $region31: #{tpu_custom_call.1} parent=27 // pred_region
          %237 = dma.done %s230, 128
        $region32: #{tpu_custom_call.1} parent=27 // pred_fallthru
          _
        %s238 = sand.u32 %s88, 1
        %s239 = scalar_lea.sflag [#allocation6], %s238
        %s240 = sand.u32 %s88, 1
        %s241 = smul.addr %s240, 8
        %s242 = scalar_lea.vmem [#allocation5], %s241
        // Predicated region
        $region33: #{tpu_custom_call.1} parent=27 // pred_check
          %p243 = pneg %p101
        $region34: #{tpu_custom_call.1} parent=27 // pred_check_branch
          %245 = sbr.rel (%p243) target = $region36
        $region35: #{tpu_custom_call.1} parent=27 // pred_region
          %246 = dma.done %s239, 128
        $region36: #{tpu_custom_call.1} parent=27 // pred_fallthru
          _
        %s247 = sand.u32 %s58, 1
        %s248 = scalar_lea.sflag [#allocation3], %s247
        %s249 = sand.u32 %s58, 1
        %s250 = smul.addr %s249, 8
        %s251 = scalar_lea.vmem [#allocation2], %s250
        %p252 = pneg %p71
        %p253 = pneg %p68
        %s254 = sand.u32 %s88, 1
        %s255 = scalar_lea.sflag [#allocation6], %s254
        %s256 = sand.u32 %s88, 1
        %s257 = smul.addr %s256, 8
        %s258 = scalar_lea.vmem [#allocation5], %s257
        %p259 = pneg %p101
        %p260 = pneg %p98
        %p261 = pneg %p129
        %p262 = pneg %p126
        %s263 = sand.u32 %s116, 1
        %s264 = scalar_lea.sflag [#allocation4], %s263
        %s265 = sand.u32 %s116, 1
        %s266 = smul.addr %s265, 4
        %s267 = scalar_lea.vmem [#allocation7], %s266
        %p268 = pneg %p157
        %p269 = pneg %p154
        %s270 = sand.u32 %s144, 1
        %s271 = scalar_lea.sflag [#allocation9], %s270
        %s272 = sand.u32 %s144, 1
        %s273 = smul.addr %s272, 4
        %s274 = scalar_lea.vmem [#allocation8], %s273
        %s275 = sadd.s32 %s33, %s34
        %s276 = sadd.s32 %s33, %s34
        %p277 = scmp.eq.s32.totalorder %s34, 0
        // Predicated region
        $region37: #{tpu_custom_call.1} parent=27 // pred_check
          %p278 = pneg %p277
        $region38: #{tpu_custom_call.1} parent=27 // pred_check_branch
          %280 = sbr.rel (%p278) target = $region40
        $region39: #{tpu_custom_call.1} parent=27 // pred_region
          %281 = vst [vmem:[%s267] sm:$0xf] 0.0
          %282 = vst [vmem:[%s274] sm:$0xf] 0.0
        $region40: #{tpu_custom_call.1} parent=27 // pred_fallthru
          _
        %v283 = vld [vmem:[%s233] sm:$0x3]
        %v284 = vld [vmem:[%s233 + $0x2] sm:$0x3]
        %v285 = vld [vmem:[%s233 + $0x4] sm:$0x3]
        %v286 = vld [vmem:[%s233 + $0x6] sm:$0x3]
        %v287 = vld [vmem:[%s242] sm:$0x3]
        %v288 = vld [vmem:[%s242 + $0x2] sm:$0x3]
        %v289 = vld [vmem:[%s242 + $0x4] sm:$0x3]
        %v290 = vld [vmem:[%s242 + $0x6] sm:$0x3]
        %vm291 = vcmask 1041408
        %v292 = vsel %vm291, %v283, -inf
        %v293 = vsel %vm291, %v284, -inf
        %v294 = vsel %vm291, %v285, -inf
        %v295 = vsel %vm291, %v286, -inf
        %v296 = vmax.f32 %v292, %v293
        %v297 = vmax.f32 %v294, %v295
        %v298 = vmax.f32 %v296, %v297
        %v299 = vsub.f32 %v283, %v298
        %v300 = vsub.f32 %v284, %v298
        %v301 = vsub.f32 %v285, %v298
        %v302 = vsub.f32 %v286, %v298
        %v303 = vmul.f32 %v299, 1.442695
        %v304 = vpow.pop %v303
        %v305 = vmul.f32 %v300, 1.442695
        %v306 = vpow.pop %v305
        %v307 = vmul.f32 %v301, 1.442695
        %v308 = vpow.pop %v307
        %v309 = vmul.f32 %v302, 1.442695
        %v310 = vpow.pop %v309
        %v311 = vsel %vm291, %v304, 0.0
        %v312 = vsel %vm291, %v306, 0.0
        %v313 = vadd.f32 %v311, %v312
        %v314 = vsel %vm291, %v308, 0.0
        %v315 = vadd.f32 %v313, %v314
        %v316 = vsel %vm291, %v310, 0.0
        %v317 = vadd.f32 %v315, %v316
        %v318 = vrcp.pop %v317
        %v319 = vmul.f32 %v304, %v318
        %v320 = vmul.f32 %v306, %v318
        %v321 = vmul.f32 %v308, %v318
        %v322 = vmul.f32 %v310, %v318
        %v323 = vld [vmem:[%s267] sm:$0xf]
        %v324 = vmul.f32 %v319, %v287
        %v325 = vmul.f32 %v320, %v288
        %v326 = vmul.f32 %v321, %v289
        %v327 = vmul.f32 %v322, %v290
        %v328 = vsel %vm291, %v324, 0.0
        %v329 = vrot.slane %v328, 4
        %v330 = vadd.f32 %v328, %v329
        %v331 = vrot.slane %v330, 2
        %v332 = vadd.f32 %v330, %v331
        %v333 = vrot.slane %v332, 1
        %v334 = vadd.f32 %v332, %v333
        %v335 = vsel %vm291, %v325, 0.0
        %v336 = vrot.slane %v335, 4
        %v337 = vadd.f32 %v335, %v336
        %v338 = vrot.slane %v337, 2
        %v339 = vadd.f32 %v337, %v338
        %v340 = vrot.slane %v339, 1
        %v341 = vadd.f32 %v339, %v340
        %v342 = vsel %vm291, %v326, 0.0
        %v343 = vrot.slane %v342, 4
        %v344 = vadd.f32 %v342, %v343
        %v345 = vrot.slane %v344, 2
        %v346 = vadd.f32 %v344, %v345
        %v347 = vrot.slane %v346, 1
        %v348 = vadd.f32 %v346, %v347
        %v349 = vsel %vm291, %v327, 0.0
        %v350 = vrot.slane %v349, 4
        %v351 = vadd.f32 %v349, %v350
        %v352 = vrot.slane %v351, 2
        %v353 = vadd.f32 %v351, %v352
        %v354 = vrot.slane %v353, 1
        %v355 = vadd.f32 %v353, %v354
        %vm360 = vcmask 1041409
        %v361 = vsel %vm360, %v341, %v334
        %vm362 = vcmask 1042434
        %v363 = vsel %vm362, %v348, %v361
        %vm364 = vcmask 1043459
        %v365 = vsel %vm364, %v355, %v363
        %v367 = vadd.f32 %v323, %v365
        %368 = vst [vmem:[%s267] sm:$0xf] %v367
        %v369 = vld [vmem:[%s274] sm:$0xf]
        %v370 = vadd.f32 %v319, %v287
        %v371 = vadd.f32 %v320, %v288
        %v372 = vadd.f32 %v321, %v289
        %v373 = vadd.f32 %v322, %v290
        %v374 = vsel %vm291, %v370, 0.0
        %v375 = vrot.slane %v374, 4
        %v376 = vadd.f32 %v374, %v375
        %v377 = vrot.slane %v376, 2
        %v378 = vadd.f32 %v376, %v377
        %v379 = vrot.slane %v378, 1
        %v380 = vadd.f32 %v378, %v379
        %v381 = vsel %vm291, %v371, 0.0
        %v382 = vrot.slane %v381, 4
        %v383 = vadd.f32 %v381, %v382
        %v384 = vrot.slane %v383, 2
        %v385 = vadd.f32 %v383, %v384
        %v386 = vrot.slane %v385, 1
        %v387 = vadd.f32 %v385, %v386
        %v388 = vsel %vm291, %v372, 0.0
        %v389 = vrot.slane %v388, 4
        %v390 = vadd.f32 %v388, %v389
        %v391 = vrot.slane %v390, 2
        %v392 = vadd.f32 %v390, %v391
        %v393 = vrot.slane %v392, 1
        %v394 = vadd.f32 %v392, %v393
        %v395 = vsel %vm291, %v373, 0.0
        %v396 = vrot.slane %v395, 4
        %v397 = vadd.f32 %v395, %v396
        %v398 = vrot.slane %v397, 2
        %v399 = vadd.f32 %v397, %v398
        %v400 = vrot.slane %v399, 1
        %v401 = vadd.f32 %v399, %v400
        %v406 = vsel %vm360, %v387, %v380
        %v407 = vsel %vm362, %v394, %v406
        %v408 = vsel %vm364, %v401, %v407
        %v410 = vadd.f32 %v369, %v408
        %411 = vst [vmem:[%s274] sm:$0xf] %v410
        %s412 = sand.u32 %s116, 1
        %s413 = scalar_lea.sflag [#allocation4], %s412
        %s414 = sand.u32 %s116, 1
        %s415 = smul.addr %s414, 4
        %s416 = scalar_lea.vmem [#allocation7], %s415
        %s417 = sand.u32 %s144, 1
        %s418 = scalar_lea.sflag [#allocation9], %s417
        %s419 = sand.u32 %s144, 1
        %s420 = smul.addr %s419, 4
        %s421 = scalar_lea.vmem [#allocation8], %s420
        // Predicated region
        $region41: #{tpu_custom_call.1} parent=27 // pred_check
          %p422 = pneg %p126
        $region42: #{tpu_custom_call.1} parent=27 // pred_check_branch
          %424 = sbr.rel (%p422) target = $region44
        $region43: #{tpu_custom_call.1} parent=27 // pred_region
          %s426 = ssub.s32 64, 64
          %427 = vsyncadd %s413, %s426
          %s428 = sadd.s32 %s33, %s32
          %s429 = smul.addr %s428, 64
          %s430 = scalar_lea.hbm %s2, %s429
          %s432 = sshll.u32 %s416, 4
          %s433 = int_to_ptr.vmem [resolvable:$true] %s432
          %435 = dma.vmem_to_hbm [thread:$0]  %s433, 64, %s430, %s413
        $region44: #{tpu_custom_call.1} parent=27 // pred_fallthru
          _
        // Predicated region
        $region45: #{tpu_custom_call.1} parent=27 // pred_check
          %p436 = pneg %p154
        $region46: #{tpu_custom_call.1} parent=27 // pred_check_branch
          %438 = sbr.rel (%p436) target = $region48
        $region47: #{tpu_custom_call.1} parent=27 // pred_region
          %s440 = ssub.s32 64, 64
          %441 = vsyncadd %s418, %s440
          %s442 = sadd.s32 %s33, %s32
          %s443 = smul.addr %s442, 64
          %s444 = scalar_lea.hbm %s3, %s443
          %s446 = sshll.u32 %s421, 4
          %s447 = int_to_ptr.vmem [resolvable:$true] %s446
          %449 = dma.vmem_to_hbm [thread:$0]  %s447, 64, %s444, %s418
        $region48: #{tpu_custom_call.1} parent=27 // pred_fallthru
          _
      $region28: #{tpu_custom_call.1} parent=5 // pred_fallthru
        _
      %p450 = scmp.le.s32.totalorder 2, %s22
      // Predicated region
      $region49: #{tpu_custom_call.1} parent=5 // pred_check
        %p451 = pneg %p450
      $region50: #{tpu_custom_call.1} parent=5 // pred_check_branch
        %453 = sbr.rel (%p451) target = $region52
      $region51: #{tpu_custom_call.1} parent=5 // pred_region
        %s454 = ssub.s32 %s22, 2
        // Predicated region
        $region53: #{tpu_custom_call.1} parent=51 // pred_check
          %p455 = pneg %p132
        $region54: #{tpu_custom_call.1} parent=51 // pred_check_branch
          %457 = sbr.rel (%p455) target = $region56
        $region55: #{tpu_custom_call.1} parent=51 // pred_region
          %s458 = sand.u32 %s117, 1
          %s459 = scalar_lea.sflag [#allocation4], %s458
          %s460 = sand.u32 %s117, 1
          %s461 = smul.addr %s460, 4
          %s462 = scalar_lea.vmem [#allocation7], %s461
          %463 = dma.done %s459, 64
        $region56: #{tpu_custom_call.1} parent=51 // pred_fallthru
          _
        // Predicated region
        $region57: #{tpu_custom_call.1} parent=51 // pred_check
          %p464 = pneg %p160
        $region58: #{tpu_custom_call.1} parent=51 // pred_check_branch
          %466 = sbr.rel (%p464) target = $region60
        $region59: #{tpu_custom_call.1} parent=51 // pred_region
          %s467 = sand.u32 %s145, 1
          %s468 = scalar_lea.sflag [#allocation9], %s467
          %s469 = sand.u32 %s145, 1
          %s470 = smul.addr %s469, 4
          %s471 = scalar_lea.vmem [#allocation8], %s470
          %472 = dma.done %s468, 64
        $region60: #{tpu_custom_call.1} parent=51 // pred_fallthru
          _
      $region52: #{tpu_custom_call.1} parent=5 // pred_fallthru
        _
    $region6: #{tpu_custom_call.1} parent=1 // loop_footer
      %s26 = sadd.s32 1, %s22
    $region7: #{tpu_custom_call.1} parent=1 // loop_footer_branch
      %21 = sbr.rel target = $region3
    $region8: #{tpu_custom_call.1} parent=1 // loop_exit
      _
    %473 = vsyncpa [#allocation3], 1
    %s474 = scalar_lea.sflag [#allocation3], 1
    %475 = vsyncpa %s474, 1
    %476 = vsyncpa [#allocation6], 1
    %s477 = scalar_lea.sflag [#allocation6], 1
    %478 = vsyncpa %s477, 1
    %479 = vsyncpa [#allocation4], 1
    %s480 = scalar_lea.sflag [#allocation4], 1
    %481 = vsyncpa %s480, 1
    %482 = vsyncpa [#allocation9], 1
    %s483 = scalar_lea.sflag [#allocation9], 1
    %484 = vsyncpa %s483, 1

</llo_original>
